<compile_context>
chip_gen: v6e
topology: v6e:2x2x1
jax: 0.10.0
libtpu: 0.0.40
codegen_flags: <defaults>
</compile_context>

<pallas_src>
import jax
import jax.numpy as jnp
from jax.experimental import pallas as pl
from jax.experimental.pallas import tpu as pltpu


def _normalize_kernel(mean_ref, inv_std_ref, x_ref, o_ref):
    # mean_ref / inv_std_ref: (TR, 1) float32.  x_ref / o_ref: (TR, TL) x.dtype.
    x = x_ref[...].astype(jnp.float32)
    o_ref[...] = ((x - mean_ref[...]) * inv_std_ref[...]).astype(o_ref.dtype)


def _round_up(a, b):
    return -(-a // b) * b


def normalize_by_channel_mean_std(x, mean, std, *, target_tile_bytes=2 << 20):
    """(x - mean[None,:,None,None]) / std[None,:,None,None] via Pallas."""
    N, C, H, W = x.shape
    assert mean.shape == (C,) and std.shape == (C,)
    dtype = x.dtype
    itemsize = jnp.dtype(dtype).itemsize
    # minimum sublane tile: 8 for 32-bit, 16 for 16-bit, 32 for 8-bit dtypes
    sub = 8 if itemsize >= 4 else (16 if itemsize == 2 else 32)

    R, L = N * C, H * W
    x2 = x.reshape(R, L)

    # Per-row parameters in float32 (exact reciprocal, no double rounding).
    mean_f32 = mean.astype(jnp.float32)
    inv_f32 = 1.0 / std.astype(jnp.float32)
    mean_rows = jnp.tile(mean_f32, N).reshape(R, 1)
    inv_rows = jnp.tile(inv_f32, N).reshape(R, 1)

    # ---- lane tile: largest multiple of 128 fitting the budget; full row when it fits.
    tl = max(128, (target_tile_bytes // (sub * itemsize)) // 128 * 128)
    if tl >= L:
        tl = L                      # full row (legal: equals full array dim)
    # else: tl is a multiple of 128; a partial last lane block is masked by Pallas.

    # ---- row tile: fill the tile budget, rounded to `sub` sublanes.
    tr = max(sub, (target_tile_bytes // (tl * itemsize)) // sub * sub)
    if tr >= R:
        tr = R                      # full row extent (legal: equals full array dim)
    # else: tr is a multiple of `sub`; a partial last row block is masked by Pallas.

    # cdiv grid: edge blocks are padded/masked automatically, the out-of-range
    # region is never written back to HBM — no jnp.pad / out[:R] copies needed.
    grid = (pl.cdiv(R, tr), pl.cdiv(L, tl))

    cost = pl.CostEstimate(
        flops=2 * R * L,
        transcendentals=0,
        bytes_accessed=2 * R * L * itemsize + 2 * R * 4,
    )

    out = pl.pallas_call(
        _normalize_kernel,
        out_shape=jax.ShapeDtypeStruct((R, L), dtype),
        grid=grid,
        in_specs=[
            pl.BlockSpec((tr, 1), lambda i, j: (i, 0)),     # mean rows (f32)
            pl.BlockSpec((tr, 1), lambda i, j: (i, 0)),     # inv_std rows (f32)
            pl.BlockSpec((tr, tl), lambda i, j: (i, j)),    # x tile
        ],
        out_specs=pl.BlockSpec((tr, tl), lambda i, j: (i, j)),
        compiler_params=pltpu.CompilerParams(
            # Both axes independent -> shards across v7x's two TensorCores;
            # no-op on single-core v5e/v6e.
            dimension_semantics=("parallel", "parallel"),
            vmem_limit_bytes=32 << 20,  # 4 live ~2 MiB buffers fit easily on v5e/v6e/v7x
        ),
        cost_estimate=cost,
    )(mean_rows, inv_rows, x2)

    return out.reshape(N, C, H, W)


if __name__ == "__main__":
    key = jax.random.PRNGKey(0)
    N, C, H, W = 2, 4, 16, 16

    kx, _ = jax.random.split(key, 2)
    x = jax.random.normal(kx, (N, C, H, W), dtype=jnp.float32)
    # deterministic "buffer" initialization (no checkpoint load)
    mean = jnp.linspace(0.1, 0.5, C, dtype=jnp.float32)
    std = jnp.linspace(0.5, 1.5, C, dtype=jnp.float32)

    # float32 path
    out = normalize_by_channel_mean_std(x, mean, std)
    jax.block_until_ready(out)
    ref = (x - mean[None, :, None, None]) / std[None, :, None, None]
    assert jnp.allclose(out, ref, atol=1e-5, rtol=1e-5), "f32 mismatch vs reference"

    # bfloat16 path (params stay f32 in-kernel, single rounding on store)
    x_bf16 = x.astype(jnp.bfloat16)
    out_bf16 = normalize_by_channel_mean_std(x_bf16, mean, std)
    jax.block_until_ready(out_bf16)
    ref_bf16 = ((x_bf16.astype(jnp.float32) - mean[None, :, None, None])
                / std[None, :, None, None])
    assert jnp.allclose(out_bf16.astype(jnp.float32), ref_bf16, atol=2e-2, rtol=2e-2), \
        "bf16 mismatch vs reference"

    print("KERNEL_OK")
</pallas_src>

<mosaic_0001>
module attributes {stable_mosaic.version = 11 : i64} {
  func.func @_normalize_kernel(%arg0: i32, %arg1: i32, %arg2: memref<8x1xf32, #tpu.memory_space<vmem>>, %arg3: memref<8x1xf32, #tpu.memory_space<vmem>>, %arg4: memref<8x256xf32, #tpu.memory_space<vmem>>, %arg5: memref<8x256xf32, #tpu.memory_space<vmem>>) attributes {dimension_semantics = [#tpu.dimension_semantics<parallel>, #tpu.dimension_semantics<parallel>], iteration_bounds = array<i64: 1, 1>, scalar_prefetch = 0 : i64, scratch_operands = 0 : i64, tpu.core_type = #tpu.core_type<tc>, window_params = [{transform_indices = @transform_0, window_bounds = array<i64: 8, 1>}, {transform_indices = @transform_1, window_bounds = array<i64: 8, 1>}, {transform_indices = @transform_2, window_bounds = array<i64: 8, 256>}, {transform_indices = @transform_3, window_bounds = array<i64: 8, 256>}]} {
    %c0 = arith.constant 0 : index
    %c0_0 = arith.constant 0 : index
    %0 = vector.load %arg4[%c0, %c0_0] : memref<8x256xf32, #tpu.memory_space<vmem>>, vector<8x256xf32>
    %c0_1 = arith.constant 0 : index
    %c0_2 = arith.constant 0 : index
    %1 = vector.load %arg2[%c0_1, %c0_2] : memref<8x1xf32, #tpu.memory_space<vmem>>, vector<8x1xf32>
    %2 = vector.broadcast %1 : vector<8x1xf32> to vector<8x256xf32>
    %3 = arith.subf %0, %2 : vector<8x256xf32>
    %c0_3 = arith.constant 0 : index
    %c0_4 = arith.constant 0 : index
    %4 = vector.load %arg3[%c0_3, %c0_4] : memref<8x1xf32, #tpu.memory_space<vmem>>, vector<8x1xf32>
    %5 = vector.broadcast %4 : vector<8x1xf32> to vector<8x256xf32>
    %6 = arith.mulf %3, %5 : vector<8x256xf32>
    %c0_5 = arith.constant 0 : index
    %c0_6 = arith.constant 0 : index
    %7 = vector.load %arg5[%c0_5, %c0_6] : memref<8x256xf32, #tpu.memory_space<vmem>>, vector<8x256xf32>
    tpu.vector_store %arg5[%c0_5, %c0_6], %6 {strides = array<i32>} : memref<8x256xf32, #tpu.memory_space<vmem>>, vector<8x256xf32>,
    return
  }
  func.func @transform_0(%arg0: i32, %arg1: i32) -> (i32, i32) {
    %c0_i32 = arith.constant 0 : i32
    %c0_i32_0 = arith.constant 0 : i32
    return %arg0, %c0_i32 : i32, i32
  }
  func.func @transform_1(%arg0: i32, %arg1: i32) -> (i32, i32) {
    %c0_i32 = arith.constant 0 : i32
    %c0_i32_0 = arith.constant 0 : i32
    return %arg0, %c0_i32 : i32, i32
  }
  func.func @transform_2(%arg0: i32, %arg1: i32) -> (i32, i32) {
    %c0_i32 = arith.constant 0 : i32
    return %arg0, %arg1 : i32, i32
  }
  func.func @transform_3(%arg0: i32, %arg1: i32) -> (i32, i32) {
    %c0_i32 = arith.constant 0 : i32
    return %arg0, %arg1 : i32, i32
  }
}

</mosaic_0001>

<llo_original>
// kernel: tpu_custom_call.1
$region0: #{tpu_custom_call.1}
  #allocation0 [shape = 'u32[]', space=smem, size = 0x4, offset = 0x4, fixed_abs, tag = 'smem constant byte address 0x4 - core index']
  #allocation1 [shape = 'u32[144,128]{1,0:T(1,128)}', space=vmem, size = 0x12000, scoped, tag = 'internal scratch']
  %s0 = inlined_call_operand.vmem [shape: f32[8,1], index: 0, kind: input, shape index: {}]
  %s1 = inlined_call_operand.vmem [shape: f32[8,1], index: 1, kind: input, shape index: {}]
  %s2 = inlined_call_operand.vmem [shape: f32[8,256], index: 2, kind: input, shape index: {}]
  %s3 = inlined_call_operand.hbm [shape: f32[8,256], index: 3, kind: output, shape index: {}]
  %s4 = sld [smem:[#allocation0]]
  $region22: #{tpu_custom_call.1} parent=0
    _
  %s6 = ssub.s32 1, %s4
  %s7 = scalar_select 0, %s6, %s4
  $region1: #{tpu_custom_call.1} parent=0
    #allocation2 [shape = 'u8[8192]{0}', space=vmem, size = 0x2000, scoped, tag = 'output window, operand 0, single buffered']
    #allocation3 [shape = 's32[1]{0}', space=sflag, size = 0x4, scoped, tag = 'scoped memory for tpu_custom_call.1']
    %8 = vsyncpa [#allocation3], 0
    // Predicated region
    $region2: #{tpu_custom_call.1} parent=1 // pred_check
      _
    $region3: #{tpu_custom_call.1} parent=1 // pred_check_branch
      %10 = sbr.rel (0) target = $region5
    $region4: #{tpu_custom_call.1} parent=1 // pred_region
      _
    $region5: #{tpu_custom_call.1} parent=1 // pred_fallthru
      _
    // Predicated region
    $region6: #{tpu_custom_call.1} parent=1 // pred_check
      _
    $region7: #{tpu_custom_call.1} parent=1 // pred_check_branch
      %12 = sbr.rel (0) target = $region9
    $region8: #{tpu_custom_call.1} parent=1 // pred_region
      _
    $region9: #{tpu_custom_call.1} parent=1 // pred_fallthru
      _
    // Predicated region
    $region10: #{tpu_custom_call.1} parent=1 // pred_check
      _
    $region11: #{tpu_custom_call.1} parent=1 // pred_check_branch
      %14 = sbr.rel (0) target = $region13
    $region12: #{tpu_custom_call.1} parent=1 // pred_region
      _
    $region13: #{tpu_custom_call.1} parent=1 // pred_fallthru
      _
    %v15 = vld [vmem:[%s2] sm:$0xff]
    %v16 = vld [vmem:[%s2 + $0x8] sm:$0xff]
    %v17 = vld [vmem:[%s0] sm:$0xff]
    %19 = vset.pattern.permute.xlu0 0
    %20 = vperm.xlu0 %19, %v17
    %v21 = vpop.permute.xlu0 %20
    %v23 = vsub.f32 %v15, %v21
    %v24 = vsub.f32 %v16, %v21
    %v25 = vld [vmem:[%s1] sm:$0xff]
    %27 = vset.pattern.permute.xlu0 0
    %28 = vperm.xlu0 %27, %v25
    %v29 = vpop.permute.xlu0 %28
    %v31 = vmul.f32 %v23, %v29
    %v32 = vmul.f32 %v24, %v29
    %33 = vst [vmem:[#allocation2] sm:$0xff] %v31
    %34 = vst [vmem:[#allocation2 + $0x8] sm:$0xff] %v32
    // Predicated region
    $region14: #{tpu_custom_call.1} parent=1 // pred_check
      _
    $region15: #{tpu_custom_call.1} parent=1 // pred_check_branch
      %36 = sbr.rel (0) target = $region17
    $region16: #{tpu_custom_call.1} parent=1 // pred_region
      %s38 = ssub.s32 256, 256
      %39 = vsyncadd [#allocation3], %s38
      %s41 = sshll.u32 [#allocation2], 4
      %s42 = int_to_ptr.vmem [resolvable:$true] %s41
      %44 = dma.vmem_to_hbm [thread:$0]  %s42, 256, %s3, [#allocation3]
    $region17: #{tpu_custom_call.1} parent=1 // pred_fallthru
      _
    // Predicated region
    $region18: #{tpu_custom_call.1} parent=1 // pred_check
      _
    $region19: #{tpu_custom_call.1} parent=1 // pred_check_branch
      %46 = sbr.rel (0) target = $region21
    $region20: #{tpu_custom_call.1} parent=1 // pred_region
      %47 = dma.done [#allocation3], 256
    $region21: #{tpu_custom_call.1} parent=1 // pred_fallthru
      _
    %48 = vsyncpa [#allocation3], 1

</llo_original>
